<compile_context>
chip_gen: v7x
topology: tpu7x:2x2x1
jax: 0.10.0
libtpu: 0.0.40
codegen_flags: <defaults>
</compile_context>

<pallas_src>
import math

import jax
import jax.numpy as jnp
from jax.experimental import pallas as pl
from jax.experimental.pallas import tpu as pltpu


def _copy_kernel(x_ref, o_ref):
    # Identity copy of one lane-dense tile.
    o_ref[...] = x_ref[...]


_LANE = 128
# ~2 MiB per block: past the block-size roofline knee (>=85% of HBM BW on v6e),
# and 4x tile (in+out, double-buffered) = 8 MiB fits every generation's VMEM.
_TARGET_BLOCK_BYTES = 2 * 1024 * 1024


def _sublane_multiple(dtype):
    itemsize = jnp.dtype(dtype).itemsize
    return {4: 8, 2: 16, 1: 32}.get(itemsize, 8)


def flatten(x):
    """Pallas equivalent of Flatten().forward(x) = x.view(x.size(0), -1)."""
    n = x.shape[0]
    d = int(math.prod(x.shape[1:]))
    total = n * d
    itemsize = jnp.dtype(x.dtype).itemsize
    sub = _sublane_multiple(x.dtype)

    # Semantic part of torch's contiguous .view: zero-cost row-major collapse.
    x2 = x.reshape(n, d)

    # TODO(synk): strictly, Flatten is metadata-only; returning x2 with no kernel
    # is the optimal implementation. The copy below is kept so the op still runs
    # through Pallas, laid out to run at HBM roofline.

    params = pltpu.CompilerParams(
        dimension_semantics=("parallel",),        # lets v7x shard the copy over 2 TCs
        vmem_limit_bytes=32 * 1024 * 1024,        # headroom above v5e's 16 MiB default
    )

    if total % _LANE == 0:
        # Lane/sublane-dense slab path: view the flat buffer as (rows, 128) and
        # tile over contiguous rows. Interior blocks are full-vreg, unmasked.
        rows = total // _LANE
        row_bytes = _LANE * itemsize
        tile_r = max(sub, (_TARGET_BLOCK_BYTES // row_bytes) // sub * sub)
        tile_r = min(tile_r, rows)                # either multiple of `sub` or full extent
        grid = (pl.cdiv(rows, tile_r),)

        flat = x2.reshape(rows, _LANE)            # layout plumbing, free in the wrapper
        out = pl.pallas_call(
            _copy_kernel,
            out_shape=jax.ShapeDtypeStruct((rows, _LANE), x.dtype),
            grid_spec=pl.GridSpec(
                grid=grid,
                in_specs=[pl.BlockSpec((tile_r, _LANE), lambda i: (i, 0))],
                out_specs=pl.BlockSpec((tile_r, _LANE), lambda i: (i, 0)),
            ),
            compiler_params=params,
        )(flat)
        return out.reshape(n, d)

    # Fallback (total not a multiple of 128): block along D with a fixed large
    # lane-dense tile and a cdiv grid; only the final partial block is masked.
    if d >= _LANE:
        per_row_budget = max(_LANE, (_TARGET_BLOCK_BYTES // (n * itemsize)) // _LANE * _LANE)
        tile_d = min((d // _LANE) * _LANE, per_row_budget)
    else:
        tile_d = d                                # full-extent block (always legal)
    grid = (pl.cdiv(d, tile_d),)

    return pl.pallas_call(
        _copy_kernel,
        out_shape=jax.ShapeDtypeStruct((n, d), x.dtype),
        grid_spec=pl.GridSpec(
            grid=grid,
            in_specs=[pl.BlockSpec((n, tile_d), lambda j: (0, j))],
            out_specs=pl.BlockSpec((n, tile_d), lambda j: (0, j)),
        ),
        compiler_params=params,
    )(x2)


if __name__ == "__main__":
    # Flatten has no parameters; just build a deterministic NCHW input.
    key = jax.random.PRNGKey(0)
    x = jax.random.normal(key, (2, 4, 16, 16), dtype=jnp.float32)  # N, C, H, W

    out = flatten(x)
    out = jax.block_until_ready(out)

    # Reference: exact semantics of x.view(x.size(0), -1) on contiguous NCHW.
    ref = jnp.reshape(x, (x.shape[0], -1))

    assert out.shape == (2, 4 * 16 * 16), out.shape
    assert out.dtype == x.dtype
    assert bool(jnp.array_equal(out, ref)), "mismatch vs reference flatten"

    print("KERNEL_OK")
</pallas_src>

<mosaic_0001>
module attributes {stable_mosaic.version = 11 : i64} {
  func.func @_copy_kernel(%arg0: i32, %arg1: memref<16x128xf32, #tpu.memory_space<vmem>>, %arg2: memref<16x128xf32, #tpu.memory_space<vmem>>) attributes {dimension_semantics = [#tpu.dimension_semantics<parallel>], iteration_bounds = array<i64: 1>, scalar_prefetch = 0 : i64, scratch_operands = 0 : i64, tpu.core_type = #tpu.core_type<tc>, window_params = [{transform_indices = @transform_0, window_bounds = array<i64: 16, 128>}, {transform_indices = @transform_1, window_bounds = array<i64: 16, 128>}]} {
    %c0 = arith.constant 0 : index
    %c0_0 = arith.constant 0 : index
    %0 = vector.load %arg1[%c0, %c0_0] : memref<16x128xf32, #tpu.memory_space<vmem>>, vector<16x128xf32>
    %c0_1 = arith.constant 0 : index
    %c0_2 = arith.constant 0 : index
    %1 = vector.load %arg2[%c0_1, %c0_2] : memref<16x128xf32, #tpu.memory_space<vmem>>, vector<16x128xf32>
    tpu.vector_store %arg2[%c0_1, %c0_2], %0 {strides = array<i32>} : memref<16x128xf32, #tpu.memory_space<vmem>>, vector<16x128xf32>,
    return
  }
  func.func @transform_0(%arg0: i32) -> (i32, i32) {
    %c0_i32 = arith.constant 0 : i32
    %c0_i32_0 = arith.constant 0 : i32
    return %arg0, %c0_i32 : i32, i32
  }
  func.func @transform_1(%arg0: i32) -> (i32, i32) {
    %c0_i32 = arith.constant 0 : i32
    %c0_i32_0 = arith.constant 0 : i32
    return %arg0, %c0_i32 : i32, i32
  }
}

</mosaic_0001>

<llo_original>
// kernel: tpu_custom_call.1
$region0: #{tpu_custom_call.1}
  #allocation0 [shape = 'u32[]', space=smem, size = 0x4, offset = 0x4, fixed_abs, tag = 'smem constant byte address 0x4 - core index']
  #allocation1 [shape = 'u32[144,128]{1,0:T(1,128)}', space=vmem, size = 0x12000, scoped, tag = 'internal scratch']
  %s0 = inlined_call_operand.hbm [shape: f32[16,128], index: 0, kind: input, shape index: {}]
  %s1 = inlined_call_operand.hbm [shape: f32[16,128], index: 1, kind: output, shape index: {}]
  %s2 = sld [smem:[#allocation0]]
  $region18: #{tpu_custom_call.1} parent=0
    _
  %s4 = ssub.s32 1, %s2
  %s5 = scalar_select 0, %s4, %s2
  $region1: #{tpu_custom_call.1} parent=0
    #allocation2 [shape = 'u8[8192]{0}', space=vmem, size = 0x2000, scoped, tag = 'input window, operand 0, single buffered']
    #allocation3 [shape = 's32[1]{0}', space=sflag, size = 0x4, scoped, tag = 'scoped memory for tpu_custom_call.1']
    #allocation4 [shape = 's32[1]{0}', space=sflag, size = 0x4, scoped, tag = 'scoped memory for tpu_custom_call.1']
    #allocation5 [shape = 'u8[8192]{0}', space=vmem, size = 0x2000, scoped, tag = 'output window, operand 0, single buffered']
    %6 = vsyncpa [#allocation3], 0
    %7 = vsyncpa [#allocation4], 0
    // Predicated region
    $region2: #{tpu_custom_call.1} parent=1 // pred_check
      _
    $region3: #{tpu_custom_call.1} parent=1 // pred_check_branch
      %9 = sbr.rel (0) target = $region5
    $region4: #{tpu_custom_call.1} parent=1 // pred_region
      %s11 = ssub.s32 256, 256
      %12 = vsyncadd [#allocation3], %s11
      %s13 = sshll.u32 [#allocation2], 4
      %s14 = int_to_ptr.vmem [resolvable:$true] %s13
      %19 = dma.hbm_to_vmem [thread:$0]  %s0, 256, %s14, [#allocation3], 128, 128, 8
    $region5: #{tpu_custom_call.1} parent=1 // pred_fallthru
      _
    // Predicated region
    $region6: #{tpu_custom_call.1} parent=1 // pred_check
      _
    $region7: #{tpu_custom_call.1} parent=1 // pred_check_branch
      %21 = sbr.rel (0) target = $region9
    $region8: #{tpu_custom_call.1} parent=1 // pred_region
      %22 = dma.done [#allocation3], 256
    $region9: #{tpu_custom_call.1} parent=1 // pred_fallthru
      _
    %v23 = vld [vmem:[#allocation2] sm:$0xff]
    %v24 = vld [vmem:[#allocation2 + $0x8] sm:$0xff]
    %25 = vst [vmem:[#allocation5] sm:$0xff] %v23
    %26 = vst [vmem:[#allocation5 + $0x8] sm:$0xff] %v24
    // Predicated region
    $region10: #{tpu_custom_call.1} parent=1 // pred_check
      _
    $region11: #{tpu_custom_call.1} parent=1 // pred_check_branch
      %28 = sbr.rel (0) target = $region13
    $region12: #{tpu_custom_call.1} parent=1 // pred_region
      %s30 = ssub.s32 256, 256
      %31 = vsyncadd [#allocation4], %s30
      %s32 = sshll.u32 [#allocation5], 4
      %s33 = int_to_ptr.vmem [resolvable:$true] %s32
      %38 = dma.vmem_to_hbm [thread:$0]  %s33, 256, %s1, [#allocation4], 128, 128, 8
    $region13: #{tpu_custom_call.1} parent=1 // pred_fallthru
      _
    // Predicated region
    $region14: #{tpu_custom_call.1} parent=1 // pred_check
      _
    $region15: #{tpu_custom_call.1} parent=1 // pred_check_branch
      %40 = sbr.rel (0) target = $region17
    $region16: #{tpu_custom_call.1} parent=1 // pred_region
      %41 = dma.done [#allocation4], 256
    $region17: #{tpu_custom_call.1} parent=1 // pred_fallthru
      _
    %42 = vsyncpa [#allocation3], 1
    %43 = vsyncpa [#allocation4], 1

</llo_original>
